<compile_context>
chip_gen: v7x
topology: tpu7x:2x2x1
jax: 0.10.0
libtpu: 0.0.40
codegen_flags: <defaults>
</compile_context>

<pallas_src>
import functools

import jax
import jax.numpy as jnp
from jax.experimental import pallas as pl
from jax.experimental.pallas import tpu as pltpu

LANE = 128  # TPU lane width; only the *hidden* feature dims are padded to this.


def qnetwork_kernel(x_ref,
                    w1_ref, b1_ref,
                    w2_ref, b2_ref,
                    w3_ref, b3_ref,
                    w4_ref, b4_ref,
                    o_ref):
    # x: (tb, state_size)   w1: (state_size, 128)   w2,w3: (128, 128)
    # w4: (128, action_size)   out: (tb, action_size)
    h = x_ref[...]
    h = jnp.maximum(
        jnp.dot(h, w1_ref[...], preferred_element_type=jnp.float32) + b1_ref[...], 0.0)
    h = jnp.maximum(
        jnp.dot(h, w2_ref[...], preferred_element_type=jnp.float32) + b2_ref[...], 0.0)
    h = jnp.maximum(
        jnp.dot(h, w3_ref[...], preferred_element_type=jnp.float32) + b3_ref[...], 0.0)
    out = jnp.dot(h, w4_ref[...], preferred_element_type=jnp.float32) + b4_ref[...]
    o_ref[...] = out.astype(o_ref.dtype)


def _round_up(n, m):
    return ((n + m - 1) // m) * m


def _pad2d(a, rows, cols):
    return jnp.pad(a, ((0, rows - a.shape[0]), (0, cols - a.shape[1])))


def prepare_params(params):
    """Pad hidden dims to 128 lanes; keep HBM-facing K (state) and N (action) at real width.

    Zero-padded weight rows contribute nothing and zero-padded output columns stay zero
    through ReLU, so values in the real columns are unchanged.  Call once per parameter set.
    """
    (w1, b1), (w2, b2), (w3, b3), (w4, b4) = params
    _b = lambda b: b.reshape(1, -1)
    w1p = _pad2d(w1, w1.shape[0], LANE)        # (state, 128)
    b1p = _pad2d(_b(b1), 1, LANE)              # (1, 128)
    w2p = _pad2d(w2, LANE, LANE)               # (128, 128)
    b2p = _pad2d(_b(b2), 1, LANE)
    w3p = _pad2d(w3, LANE, LANE)               # (128, 128)
    b3p = _pad2d(_b(b3), 1, LANE)
    w4p = _pad2d(w4, LANE, w4.shape[1])        # (128, action)
    b4p = _b(b4)                               # (1, action)
    return [(w1p, b1p), (w2p, b2p), (w3p, b3p), (w4p, b4p)]


def _choose_tiling(batch, batch_tile):
    """Pick (tb, padded_batch): tb multiple of 8, padded_batch = tb * n_tiles, minimal pad."""
    tile_cap = max(8, _round_up(batch_tile, 8))   # guard non-multiple-of-8 callers
    batch8 = _round_up(batch, 8)
    if batch8 <= tile_cap:
        return batch8, batch8
    n_tiles = -(-batch8 // tile_cap)
    tb = _round_up(-(-batch8 // n_tiles), 8)
    return tb, tb * n_tiles


@functools.partial(jax.jit, static_argnames=("batch_tile",))
def qnetwork_forward(x, padded_params, *, batch_tile=1024):
    """x: (B, state_size) f32; padded_params: output of prepare_params()."""
    (w1, b1), (w2, b2), (w3, b3), (w4, b4) = padded_params
    batch, state_size = x.shape
    action_size = w4.shape[1]

    tb, padded_batch = _choose_tiling(batch, batch_tile)
    if padded_batch != batch:
        x = jnp.pad(x, ((0, padded_batch - batch), (0, 0)))   # rows only; no lane pad

    grid = (padded_batch // tb,)
    act_map = lambda i: (i, 0)     # batch-tiled activations / output
    const_map = lambda i: (0, 0)   # params: same block every step -> VMEM-resident

    param_list = [w1, b1, w2, b2, w3, b3, w4, b4]
    in_specs = [pl.BlockSpec((tb, state_size), act_map)] + \
               [pl.BlockSpec(p.shape, const_map) for p in param_list]
    out_spec = pl.BlockSpec((tb, action_size), act_map)

    # Advisory cost estimate: real HBM traffic, actual kernel FLOPs.
    flops = 2 * padded_batch * (state_size * LANE + LANE * LANE + LANE * LANE
                                + LANE * action_size)
    param_bytes = sum(int(p.size) * p.dtype.itemsize for p in param_list)
    bytes_accessed = (padded_batch * state_size * 4
                      + padded_batch * action_size * 4
                      + param_bytes)

    out_padded = pl.pallas_call(
        qnetwork_kernel,
        out_shape=jax.ShapeDtypeStruct((padded_batch, action_size), jnp.float32),
        grid=grid,
        in_specs=in_specs,
        out_specs=out_spec,
        compiler_params=pltpu.CompilerParams(
            dimension_semantics=("parallel",)),  # megacore split over batch on v7x
        cost_estimate=pl.CostEstimate(
            flops=int(flops), transcendentals=0, bytes_accessed=int(bytes_accessed)),
    )(x, w1, b1, w2, b2, w3, b3, w4, b4)

    return out_padded[:batch]   # output is already action_size wide; only trim row pad

    # TODO(synk): optional bf16 activation/weight path (keep f32 accumulation) would halve
    # activation HBM traffic and boost MXU throughput on v6e/v7x; kept f32 for exactness.


# ------------------------- init / reference (pure JAX) -------------------------

def init_linear(key, fan_in, fan_out):
    """Deterministic init mimicking PyTorch nn.Linear default (uniform +-1/sqrt(fan_in))."""
    kw, kb = jax.random.split(key)
    bound = 1.0 / jnp.sqrt(fan_in)
    w = jax.random.uniform(kw, (fan_in, fan_out), jnp.float32, -bound, bound)
    b = jax.random.uniform(kb, (1, fan_out), jnp.float32, -bound, bound)
    return w, b


def make_params(key, state_size, action_size, hidden_units=(64, 32, 16)):
    dims = [state_size, *hidden_units, action_size]
    keys = jax.random.split(key, len(dims) - 1)
    return [init_linear(k, dims[i], dims[i + 1]) for i, k in enumerate(keys)]


def reference_forward(x, params):
    h = x
    for i, (w, b) in enumerate(params):
        h = h @ w + b
        if i < len(params) - 1:
            h = jnp.maximum(h, 0.0)
    return h


if __name__ == "__main__":
    key = jax.random.PRNGKey(0)
    k_params, k_x = jax.random.split(key)

    batch = 2
    state_size = 8
    action_size = 4

    params = make_params(k_params, state_size, action_size)
    padded_params = prepare_params(params)
    x = jax.random.normal(k_x, (batch, state_size), jnp.float32)

    out = qnetwork_forward(x, padded_params)
    out = jax.block_until_ready(out)

    ref = reference_forward(x, params)
    assert out.shape == (batch, action_size)
    assert jnp.allclose(out, ref, atol=1e-4, rtol=1e-4), "mismatch vs pure-JAX reference"

    # Exercise the multi-tile grid path (grid > 1, minimal batch padding).
    x2 = jax.random.normal(jax.random.PRNGKey(1), (20, state_size), jnp.float32)
    out2 = jax.block_until_ready(
        qnetwork_forward(x2, padded_params, batch_tile=8))
    ref2 = reference_forward(x2, params)
    assert out2.shape == (20, action_size)
    assert jnp.allclose(out2, ref2, atol=1e-4, rtol=1e-4), "mismatch on tiled path"

    # Non-multiple-of-8 batch_tile robustness check (rounded up internally).
    out3 = jax.block_until_ready(
        qnetwork_forward(x2, padded_params, batch_tile=12))
    assert jnp.allclose(out3, ref2, atol=1e-4, rtol=1e-4), "mismatch on rounded-tile path"

    print("KERNEL_OK")
</pallas_src>

<mosaic_0001>
module attributes {stable_mosaic.version = 11 : i64} {
  func.func @qnetwork_kernel(%arg0: i32, %arg1: memref<8x8xf32, #tpu.memory_space<vmem>>, %arg2: memref<8x128xf32, #tpu.memory_space<vmem>>, %arg3: memref<1x128xf32, #tpu.memory_space<vmem>>, %arg4: memref<128x128xf32, #tpu.memory_space<vmem>>, %arg5: memref<1x128xf32, #tpu.memory_space<vmem>>, %arg6: memref<128x128xf32, #tpu.memory_space<vmem>>, %arg7: memref<1x128xf32, #tpu.memory_space<vmem>>, %arg8: memref<128x4xf32, #tpu.memory_space<vmem>>, %arg9: memref<1x4xf32, #tpu.memory_space<vmem>>, %arg10: memref<8x4xf32, #tpu.memory_space<vmem>>) attributes {dimension_semantics = [#tpu.dimension_semantics<parallel>], iteration_bounds = array<i64: 1>, scalar_prefetch = 0 : i64, scratch_operands = 0 : i64, tpu.core_type = #tpu.core_type<tc>, window_params = [{transform_indices = @transform_0, window_bounds = array<i64: 8, 8>}, {pipeline_mode = #tpu.pipeline_mode<synchronous>, transform_indices = @transform_1, window_bounds = array<i64: 8, 128>}, {pipeline_mode = #tpu.pipeline_mode<synchronous>, transform_indices = @transform_2, window_bounds = array<i64: 1, 128>}, {pipeline_mode = #tpu.pipeline_mode<synchronous>, transform_indices = @transform_3, window_bounds = array<i64: 128, 128>}, {pipeline_mode = #tpu.pipeline_mode<synchronous>, transform_indices = @transform_4, window_bounds = array<i64: 1, 128>}, {pipeline_mode = #tpu.pipeline_mode<synchronous>, transform_indices = @transform_5, window_bounds = array<i64: 128, 128>}, {pipeline_mode = #tpu.pipeline_mode<synchronous>, transform_indices = @transform_6, window_bounds = array<i64: 1, 128>}, {pipeline_mode = #tpu.pipeline_mode<synchronous>, transform_indices = @transform_7, window_bounds = array<i64: 128, 4>}, {pipeline_mode = #tpu.pipeline_mode<synchronous>, transform_indices = @transform_8, window_bounds = array<i64: 1, 4>}, {transform_indices = @transform_9, window_bounds = array<i64: 8, 4>}]} {
    %c0 = arith.constant 0 : index
    %c0_0 = arith.constant 0 : index
    %0 = vector.load %arg1[%c0, %c0_0] : memref<8x8xf32, #tpu.memory_space<vmem>>, vector<8x8xf32>
    %c0_1 = arith.constant 0 : index
    %c0_2 = arith.constant 0 : index
    %1 = vector.load %arg2[%c0_1, %c0_2] : memref<8x128xf32, #tpu.memory_space<vmem>>, vector<8x128xf32>
    %cst = arith.constant dense<0.000000e+00> : vector<8x128xf32>
    %2 = tpu.matmul %0, %1, %cst {dimension_numbers = #tpu.dot_dimension_numbers<[1], [0], [0], [1], [0, 0, 1, 1], [], []>} : vector<8x8xf32>, vector<8x128xf32>, vector<8x128xf32> -> vector<8x128xf32>
    %c0_3 = arith.constant 0 : index
    %c0_4 = arith.constant 0 : index
    %3 = vector.load %arg3[%c0_3, %c0_4] : memref<1x128xf32, #tpu.memory_space<vmem>>, vector<1x128xf32>
    %4 = vector.broadcast %3 : vector<1x128xf32> to vector<8x128xf32>
    %5 = arith.addf %2, %4 : vector<8x128xf32>
    %cst_5 = arith.constant 0.000000e+00 : f32
    %6 = vector.broadcast %cst_5 : f32 to vector<8x128xf32>
    %7 = arith.maximumf %5, %6 : vector<8x128xf32>
    %c0_6 = arith.constant 0 : index
    %c0_7 = arith.constant 0 : index
    %8 = vector.load %arg4[%c0_6, %c0_7] : memref<128x128xf32, #tpu.memory_space<vmem>>, vector<128x128xf32>
    %cst_8 = arith.constant dense<0.000000e+00> : vector<8x128xf32>
    %9 = tpu.matmul %7, %8, %cst_8 {dimension_numbers = #tpu.dot_dimension_numbers<[1], [0], [0], [1], [0, 0, 1, 1], [], []>} : vector<8x128xf32>, vector<128x128xf32>, vector<8x128xf32> -> vector<8x128xf32>
    %c0_9 = arith.constant 0 : index
    %c0_10 = arith.constant 0 : index
    %10 = vector.load %arg5[%c0_9, %c0_10] : memref<1x128xf32, #tpu.memory_space<vmem>>, vector<1x128xf32>
    %11 = vector.broadcast %10 : vector<1x128xf32> to vector<8x128xf32>
    %12 = arith.addf %9, %11 : vector<8x128xf32>
    %cst_11 = arith.constant 0.000000e+00 : f32
    %13 = vector.broadcast %cst_11 : f32 to vector<8x128xf32>
    %14 = arith.maximumf %12, %13 : vector<8x128xf32>
    %c0_12 = arith.constant 0 : index
    %c0_13 = arith.constant 0 : index
    %15 = vector.load %arg6[%c0_12, %c0_13] : memref<128x128xf32, #tpu.memory_space<vmem>>, vector<128x128xf32>
    %cst_14 = arith.constant dense<0.000000e+00> : vector<8x128xf32>
    %16 = tpu.matmul %14, %15, %cst_14 {dimension_numbers = #tpu.dot_dimension_numbers<[1], [0], [0], [1], [0, 0, 1, 1], [], []>} : vector<8x128xf32>, vector<128x128xf32>, vector<8x128xf32> -> vector<8x128xf32>
    %c0_15 = arith.constant 0 : index
    %c0_16 = arith.constant 0 : index
    %17 = vector.load %arg7[%c0_15, %c0_16] : memref<1x128xf32, #tpu.memory_space<vmem>>, vector<1x128xf32>
    %18 = vector.broadcast %17 : vector<1x128xf32> to vector<8x128xf32>
    %19 = arith.addf %16, %18 : vector<8x128xf32>
    %cst_17 = arith.constant 0.000000e+00 : f32
    %20 = vector.broadcast %cst_17 : f32 to vector<8x128xf32>
    %21 = arith.maximumf %19, %20 : vector<8x128xf32>
    %c0_18 = arith.constant 0 : index
    %c0_19 = arith.constant 0 : index
    %22 = vector.load %arg8[%c0_18, %c0_19] : memref<128x4xf32, #tpu.memory_space<vmem>>, vector<128x4xf32>
    %cst_20 = arith.constant dense<0.000000e+00> : vector<8x4xf32>
    %23 = tpu.matmul %21, %22, %cst_20 {dimension_numbers = #tpu.dot_dimension_numbers<[1], [0], [0], [1], [0, 0, 1, 1], [], []>} : vector<8x128xf32>, vector<128x4xf32>, vector<8x4xf32> -> vector<8x4xf32>
    %c0_21 = arith.constant 0 : index
    %c0_22 = arith.constant 0 : index
    %24 = vector.load %arg9[%c0_21, %c0_22] : memref<1x4xf32, #tpu.memory_space<vmem>>, vector<1x4xf32>
    %25 = vector.broadcast %24 : vector<1x4xf32> to vector<8x4xf32>
    %26 = arith.addf %23, %25 : vector<8x4xf32>
    %c0_23 = arith.constant 0 : index
    %c0_24 = arith.constant 0 : index
    %27 = vector.load %arg10[%c0_23, %c0_24] : memref<8x4xf32, #tpu.memory_space<vmem>>, vector<8x4xf32>
    tpu.vector_store %arg10[%c0_23, %c0_24], %26 {strides = array<i32>} : memref<8x4xf32, #tpu.memory_space<vmem>>, vector<8x4xf32>,
    return
  }
  func.func @transform_0(%arg0: i32) -> (i32, i32) {
    %c0_i32 = arith.constant 0 : i32
    %c0_i32_0 = arith.constant 0 : i32
    return %arg0, %c0_i32 : i32, i32
  }
  func.func @transform_1(%arg0: i32) -> (i32, i32) {
    %c0_i32 = arith.constant 0 : i32
    %c0_i32_0 = arith.constant 0 : i32
    %c0_i32_1 = arith.constant 0 : i32
    return %c0_i32, %c0_i32_0 : i32, i32
  }
  func.func @transform_2(%arg0: i32) -> (i32, i32) {
    %c0_i32 = arith.constant 0 : i32
    %c0_i32_0 = arith.constant 0 : i32
    %c0_i32_1 = arith.constant 0 : i32
    return %c0_i32, %c0_i32_0 : i32, i32
  }
  func.func @transform_3(%arg0: i32) -> (i32, i32) {
    %c0_i32 = arith.constant 0 : i32
    %c0_i32_0 = arith.constant 0 : i32
    %c0_i32_1 = arith.constant 0 : i32
    return %c0_i32, %c0_i32_0 : i32, i32
  }
  func.func @transform_4(%arg0: i32) -> (i32, i32) {
    %c0_i32 = arith.constant 0 : i32
    %c0_i32_0 = arith.constant 0 : i32
    %c0_i32_1 = arith.constant 0 : i32
    return %c0_i32, %c0_i32_0 : i32, i32
  }
  func.func @transform_5(%arg0: i32) -> (i32, i32) {
    %c0_i32 = arith.constant 0 : i32
    %c0_i32_0 = arith.constant 0 : i32
    %c0_i32_1 = arith.constant 0 : i32
    return %c0_i32, %c0_i32_0 : i32, i32
  }
  func.func @transform_6(%arg0: i32) -> (i32, i32) {
    %c0_i32 = arith.constant 0 : i32
    %c0_i32_0 = arith.constant 0 : i32
    %c0_i32_1 = arith.constant 0 : i32
    return %c0_i32, %c0_i32_0 : i32, i32
  }
  func.func @transform_7(%arg0: i32) -> (i32, i32) {
    %c0_i32 = arith.constant 0 : i32
    %c0_i32_0 = arith.constant 0 : i32
    %c0_i32_1 = arith.constant 0 : i32
    return %c0_i32, %c0_i32_0 : i32, i32
  }
  func.func @transform_8(%arg0: i32) -> (i32, i32) {
    %c0_i32 = arith.constant 0 : i32
    %c0_i32_0 = arith.constant 0 : i32
    %c0_i32_1 = arith.constant 0 : i32
    return %c0_i32, %c0_i32_0 : i32, i32
  }
  func.func @transform_9(%arg0: i32) -> (i32, i32) {
    %c0_i32 = arith.constant 0 : i32
    %c0_i32_0 = arith.constant 0 : i32
    return %arg0, %c0_i32 : i32, i32
  }
}

</mosaic_0001>

<llo_original>
// kernel: qnetwork_forward.1
$region0: #{qnetwork_forward.1}
  #allocation0 [shape = 'u32[]', space=smem, size = 0x4, offset = 0x4, fixed_abs, tag = 'smem constant byte address 0x4 - core index']
  #allocation1 [shape = 'u32[144,128]{1,0:T(1,128)}', space=vmem, size = 0x12000, scoped, tag = 'internal scratch']
  %s0 = inlined_call_operand.vmem [shape: f32[8,8], index: 0, kind: input, shape index: {}]
  %s1 = inlined_call_operand.vmem [shape: f32[8,128], index: 1, kind: input, shape index: {}]
  %s2 = inlined_call_operand.vmem [shape: f32[1,128], index: 2, kind: input, shape index: {}]
  %s3 = inlined_call_operand.vmem [shape: f32[128,128], index: 3, kind: input, shape index: {}]
  %s4 = inlined_call_operand.vmem [shape: f32[1,128], index: 4, kind: input, shape index: {}]
  %s5 = inlined_call_operand.hbm [shape: f32[128,128], index: 5, kind: input, shape index: {}]
  %s6 = inlined_call_operand.vmem [shape: f32[1,128], index: 6, kind: input, shape index: {}]
  %s7 = inlined_call_operand.vmem [shape: f32[128,4], index: 7, kind: input, shape index: {}]
  %s8 = inlined_call_operand.vmem [shape: f32[1,4], index: 8, kind: input, shape index: {}]
  %s9 = inlined_call_operand.vmem [shape: f32[8,4], index: 9, kind: output, shape index: {}]
  %s10 = sld [smem:[#allocation0]]
  $region50: #{qnetwork_forward.1} parent=0
    _
  %s12 = ssub.s32 1, %s10
  %s13 = scalar_select 0, %s12, %s10
  $region1: #{qnetwork_forward.1} parent=0
    #allocation2 [shape = 'u8[65536]{0}', space=vmem, size = 0x10000, scoped, tag = 'input window, operand 5, single buffered']
    #allocation3 [shape = 's32[1]{0}', space=sflag, size = 0x4, scoped, tag = 'scoped memory for qnetwork_forward.1']
    %14 = vsyncpa [#allocation3], 0
    // Predicated region
    $region2: #{qnetwork_forward.1} parent=1 // pred_check
      _
    $region3: #{qnetwork_forward.1} parent=1 // pred_check_branch
      %16 = sbr.rel (0) target = $region5
    $region4: #{qnetwork_forward.1} parent=1 // pred_region
      _
    $region5: #{qnetwork_forward.1} parent=1 // pred_fallthru
      _
    // Predicated region
    $region6: #{qnetwork_forward.1} parent=1 // pred_check
      _
    $region7: #{qnetwork_forward.1} parent=1 // pred_check_branch
      %18 = sbr.rel (0) target = $region9
    $region8: #{qnetwork_forward.1} parent=1 // pred_region
      _
    $region9: #{qnetwork_forward.1} parent=1 // pred_fallthru
      _
    // Predicated region
    $region10: #{qnetwork_forward.1} parent=1 // pred_check
      _
    $region11: #{qnetwork_forward.1} parent=1 // pred_check_branch
      %20 = sbr.rel (0) target = $region13
    $region12: #{qnetwork_forward.1} parent=1 // pred_region
      _
    $region13: #{qnetwork_forward.1} parent=1 // pred_fallthru
      _
    // Predicated region
    $region14: #{qnetwork_forward.1} parent=1 // pred_check
      _
    $region15: #{qnetwork_forward.1} parent=1 // pred_check_branch
      %22 = sbr.rel (0) target = $region17
    $region16: #{qnetwork_forward.1} parent=1 // pred_region
      _
    $region17: #{qnetwork_forward.1} parent=1 // pred_fallthru
      _
    // Predicated region
    $region18: #{qnetwork_forward.1} parent=1 // pred_check
      _
    $region19: #{qnetwork_forward.1} parent=1 // pred_check_branch
      %24 = sbr.rel (0) target = $region21
    $region20: #{qnetwork_forward.1} parent=1 // pred_region
      _
    $region21: #{qnetwork_forward.1} parent=1 // pred_fallthru
      _
    // Predicated region
    $region22: #{qnetwork_forward.1} parent=1 // pred_check
      _
    $region23: #{qnetwork_forward.1} parent=1 // pred_check_branch
      %26 = sbr.rel (0) target = $region25
    $region24: #{qnetwork_forward.1} parent=1 // pred_region
      %s28 = ssub.s32 2048, 2048
      %29 = vsyncadd [#allocation3], %s28
      %s30 = sshll.u32 [#allocation2], 4
      %s31 = int_to_ptr.vmem [resolvable:$true] %s30
      %36 = dma.hbm_to_vmem [thread:$0]  %s5, 2048, %s31, [#allocation3], 128, 128, 8
    $region25: #{qnetwork_forward.1} parent=1 // pred_fallthru
      _
    // Predicated region
    $region26: #{qnetwork_forward.1} parent=1 // pred_check
      _
    $region27: #{qnetwork_forward.1} parent=1 // pred_check_branch
      %38 = sbr.rel (0) target = $region29
    $region28: #{qnetwork_forward.1} parent=1 // pred_region
      _
    $region29: #{qnetwork_forward.1} parent=1 // pred_fallthru
      _
    // Predicated region
    $region30: #{qnetwork_forward.1} parent=1 // pred_check
      _
    $region31: #{qnetwork_forward.1} parent=1 // pred_check_branch
      %40 = sbr.rel (0) target = $region33
    $region32: #{qnetwork_forward.1} parent=1 // pred_region
      _
    $region33: #{qnetwork_forward.1} parent=1 // pred_fallthru
      _
    // Predicated region
    $region34: #{qnetwork_forward.1} parent=1 // pred_check
      _
    $region35: #{qnetwork_forward.1} parent=1 // pred_check_branch
      %42 = sbr.rel (0) target = $region37
    $region36: #{qnetwork_forward.1} parent=1 // pred_region
      _
    $region37: #{qnetwork_forward.1} parent=1 // pred_fallthru
      _
    // Predicated region
    $region38: #{qnetwork_forward.1} parent=1 // pred_check
      _
    $region39: #{qnetwork_forward.1} parent=1 // pred_check_branch
      %44 = sbr.rel (0) target = $region41
    $region40: #{qnetwork_forward.1} parent=1 // pred_region
      %45 = dma.done [#allocation3], 2048
    $region41: #{qnetwork_forward.1} parent=1 // pred_fallthru
      _
    %v46 = vld [vmem:[%s0] sm:$0xff]
    %v47 = vld [vmem:[%s1] sm:$0xff]
    %v48 = vld [vmem:[%s2] sm:$0x1]
    %v50 = vlaneseq
    %v51 = vshrl.u32 %v50, 7
    %v52 = vsub.s32 0, %v51
    %v53 = vrot.slane %v48, %v52
    %vm55 = vcmask 64512
    %v57 = vsel %vm55, %v46, 0
    %59 = vmatprep.subr.mxu0 0.0
    %60 = vmatpush1.msra.mxu0 %v47
    %61 = vmatprep.subr.mxu0 0.0
    %62 = vmatpush1.msra.mxu0 0.0
    %63 = vmatprep.subr.mxu0 0.0
    %64 = vmatpush1.msra.mxu0 0.0
    %65 = vmatprep.subr.mxu0 0.0
    %66 = vmatpush1.msra.mxu0 0.0
    %67 = vmatprep.subr.mxu0 0.0
    %68 = vmatpush1.msra.mxu0 0.0
    %69 = vmatprep.subr.mxu0 0.0
    %70 = vmatpush1.msra.mxu0 0.0
    %71 = vmatprep.subr.mxu0 0.0
    %72 = vmatpush1.msra.mxu0 0.0
    %73 = vmatprep.subr.mxu0 0.0
    %74 = vmatpush1.msra.mxu0 0.0
    %75 = vmatprep.subr.mxu0 0.0
    %76 = vmatpush1.msra.mxu0 0.0
    %77 = vmatprep.subr.mxu0 0.0
    %78 = vmatpush1.msra.mxu0 0.0
    %79 = vmatprep.subr.mxu0 0.0
    %80 = vmatpush1.msra.mxu0 0.0
    %81 = vmatprep.subr.mxu0 0.0
    %82 = vmatpush1.msra.mxu0 0.0
    %83 = vmatprep.subr.mxu0 0.0
    %84 = vmatpush1.msra.mxu0 0.0
    %85 = vmatprep.subr.mxu0 0.0
    %86 = vmatpush1.msra.mxu0 0.0
    %87 = vmatprep.subr.mxu0 0.0
    %88 = vmatpush1.msra.mxu0 0.0
    %89 = vmatprep.subr.mxu0 0.0
    %90 = vmatpush1.msra.mxu0 0.0
    %91 = vmatprep.subr.mxu0 0.0
    %92 = vmatpush1.msra.mxu0 0.0
    %93 = vmatprep.subr.mxu0 0.0
    %94 = vmatpush1.msra.mxu0 0.0
    %95 = vmatprep.subr.mxu0 0.0
    %96 = vmatpush1.msra.mxu0 0.0
    %97 = vmatprep.subr.mxu0 0.0
    %98 = vmatpush1.msra.mxu0 0.0
    %99 = vmatprep.subr.mxu0 0.0
    %100 = vmatpush1.msra.mxu0 0.0
    %101 = vmatprep.subr.mxu0 0.0
    %102 = vmatpush1.msra.mxu0 0.0
    %103 = vmatprep.subr.mxu0 0.0
    %104 = vmatpush1.msra.mxu0 0.0
    %105 = vmatprep.subr.mxu0 0.0
    %106 = vmatpush1.msra.mxu0 0.0
    %107 = vmatprep.subr.mxu0 0.0
    %108 = vmatpush1.msra.mxu0 0.0
    %109 = vmatprep.subr.mxu0 0.0
    %110 = vmatpush1.msra.mxu0 0.0
    %111 = vmatprep.subr.mxu0 0.0
    %112 = vmatpush1.msra.mxu0 0.0
    %113 = vmatprep.subr.mxu0 0.0
    %114 = vmatpush1.msra.mxu0 0.0
    %115 = vmatprep.subr.mxu0 0.0
    %116 = vmatpush1.msra.mxu0 0.0
    %117 = vmatprep.subr.mxu0 0.0
    %118 = vmatpush1.msra.mxu0 0.0
    %119 = vmatprep.subr.mxu0 0.0
    %120 = vmatpush1.msra.mxu0 0.0
    %121 = vmatprep.subr.mxu0 0.0
    %122 = vmatpush1.msra.mxu0 0.0
    %123 = vmatprep.mubr.f32.mxu0 0.0
    %124 = vmatmul.mubr.f32.gmra.mrb[0].mxu0 %v57
    %v125 = vpop.f32.mrb[0].mxu0
    %v126 = vadd.f32 %v53, %v125
    %v127 = vpop.f32.mrb[0].mxu0
    %128 = vdwg.mxu0
    %v129 = vmax.f32 %v126, 0.0
    %v130 = vld [vmem:[%s3] sm:$0xff]
    %v131 = vld [vmem:[%s3 + $0x8] sm:$0xff]
    %v132 = vld [vmem:[%s3 + $0x10] sm:$0xff]
    %v133 = vld [vmem:[%s3 + $0x18] sm:$0xff]
    %v134 = vld [vmem:[%s3 + $0x20] sm:$0xff]
    %v135 = vld [vmem:[%s3 + $0x28] sm:$0xff]
    %v136 = vld [vmem:[%s3 + $0x30] sm:$0xff]
    %v137 = vld [vmem:[%s3 + $0x38] sm:$0xff]
    %v138 = vld [vmem:[%s3 + $0x40] sm:$0xff]
    %v139 = vld [vmem:[%s3 + $0x48] sm:$0xff]
    %v140 = vld [vmem:[%s3 + $0x50] sm:$0xff]
    %v141 = vld [vmem:[%s3 + $0x58] sm:$0xff]
    %v142 = vld [vmem:[%s3 + $0x60] sm:$0xff]
    %v143 = vld [vmem:[%s3 + $0x68] sm:$0xff]
    %v144 = vld [vmem:[%s3 + $0x70] sm:$0xff]
    %v145 = vld [vmem:[%s3 + $0x78] sm:$0xff]
    %v146 = vld [vmem:[%s4] sm:$0x1]
    %v148 = vlaneseq
    %v149 = vshrl.u32 %v148, 7
    %v150 = vsub.s32 0, %v149
    %v151 = vrot.slane %v146, %v150
    %153 = vmatprep.subr.mxu0 0.0
    %154 = vmatpush1.msra.mxu0 %v130
    %155 = vmatprep.subr.mxu0 0.0
    %156 = vmatpush1.msra.mxu0 %v131
    %157 = vmatprep.subr.mxu0 0.0
    %158 = vmatpush1.msra.mxu0 %v132
    %159 = vmatprep.subr.mxu0 0.0
    %160 = vmatpush1.msra.mxu0 %v133
    %161 = vmatprep.subr.mxu0 0.0
    %162 = vmatpush1.msra.mxu0 %v134
    %163 = vmatprep.subr.mxu0 0.0
    %164 = vmatpush1.msra.mxu0 %v135
    %165 = vmatprep.subr.mxu0 0.0
    %166 = vmatpush1.msra.mxu0 %v136
    %167 = vmatprep.subr.mxu0 0.0
    %168 = vmatpush1.msra.mxu0 %v137
    %169 = vmatprep.subr.mxu0 0.0
    %170 = vmatpush1.msra.mxu0 %v138
    %171 = vmatprep.subr.mxu0 0.0
    %172 = vmatpush1.msra.mxu0 %v139
    %173 = vmatprep.subr.mxu0 0.0
    %174 = vmatpush1.msra.mxu0 %v140
    %175 = vmatprep.subr.mxu0 0.0
    %176 = vmatpush1.msra.mxu0 %v141
    %177 = vmatprep.subr.mxu0 0.0
    %178 = vmatpush1.msra.mxu0 %v142
    %179 = vmatprep.subr.mxu0 0.0
    %180 = vmatpush1.msra.mxu0 %v143
    %181 = vmatprep.subr.mxu0 0.0
    %182 = vmatpush1.msra.mxu0 %v144
    %183 = vmatprep.subr.mxu0 0.0
    %184 = vmatpush1.msra.mxu0 %v145
    %185 = vmatprep.subr.mxu0 0.0
    %186 = vmatpush1.msra.mxu0 0.0
    %187 = vmatprep.subr.mxu0 0.0
    %188 = vmatpush1.msra.mxu0 0.0
    %189 = vmatprep.subr.mxu0 0.0
    %190 = vmatpush1.msra.mxu0 0.0
    %191 = vmatprep.subr.mxu0 0.0
    %192 = vmatpush1.msra.mxu0 0.0
    %193 = vmatprep.subr.mxu0 0.0
    %194 = vmatpush1.msra.mxu0 0.0
    %195 = vmatprep.subr.mxu0 0.0
    %196 = vmatpush1.msra.mxu0 0.0
    %197 = vmatprep.subr.mxu0 0.0
    %198 = vmatpush1.msra.mxu0 0.0
    %199 = vmatprep.subr.mxu0 0.0
    %200 = vmatpush1.msra.mxu0 0.0
    %201 = vmatprep.subr.mxu0 0.0
    %202 = vmatpush1.msra.mxu0 0.0
    %203 = vmatprep.subr.mxu0 0.0
    %204 = vmatpush1.msra.mxu0 0.0
    %205 = vmatprep.subr.mxu0 0.0
    %206 = vmatpush1.msra.mxu0 0.0
    %207 = vmatprep.subr.mxu0 0.0
    %208 = vmatpush1.msra.mxu0 0.0
    %209 = vmatprep.subr.mxu0 0.0
    %210 = vmatpush1.msra.mxu0 0.0
    %211 = vmatprep.subr.mxu0 0.0
    %212 = vmatpush1.msra.mxu0 0.0
    %213 = vmatprep.subr.mxu0 0.0
    %214 = vmatpush1.msra.mxu0 0.0
    %215 = vmatprep.subr.mxu0 0.0
    %216 = vmatpush1.msra.mxu0 0.0
    %217 = vmatprep.mubr.f32.mxu0 0.0
    %218 = vmatmul.mubr.f32.gmra.mrb[0].mxu0 %v129
    %v219 = vpop.f32.mrb[0].mxu0
    %v220 = vadd.f32 %v151, %v219
    %v221 = vpop.f32.mrb[0].mxu0
    %222 = vdwg.mxu0
    %v223 = vmax.f32 %v220, 0.0
    %v224 = vld [vmem:[#allocation2] sm:$0xff]
    %v225 = vld [vmem:[#allocation2 + $0x8] sm:$0xff]
    %v226 = vld [vmem:[#allocation2 + $0x10] sm:$0xff]
    %v227 = vld [vmem:[#allocation2 + $0x18] sm:$0xff]
    %v228 = vld [vmem:[#allocation2 + $0x20] sm:$0xff]
    %v229 = vld [vmem:[#allocation2 + $0x28] sm:$0xff]
    %v230 = vld [vmem:[#allocation2 + $0x30] sm:$0xff]
    %v231 = vld [vmem:[#allocation2 + $0x38] sm:$0xff]
    %v232 = vld [vmem:[#allocation2 + $0x40] sm:$0xff]
    %v233 = vld [vmem:[#allocation2 + $0x48] sm:$0xff]
    %v234 = vld [vmem:[#allocation2 + $0x50] sm:$0xff]
    %v235 = vld [vmem:[#allocation2 + $0x58] sm:$0xff]
    %v236 = vld [vmem:[#allocation2 + $0x60] sm:$0xff]
    %v237 = vld [vmem:[#allocation2 + $0x68] sm:$0xff]
    %v238 = vld [vmem:[#allocation2 + $0x70] sm:$0xff]
    %v239 = vld [vmem:[#allocation2 + $0x78] sm:$0xff]
    %v240 = vld [vmem:[%s6] sm:$0x1]
    %v242 = vlaneseq
    %v243 = vshrl.u32 %v242, 7
    %v244 = vsub.s32 0, %v243
    %v245 = vrot.slane %v240, %v244
    %247 = vmatprep.subr.mxu0 0.0
    %248 = vmatpush1.msra.mxu0 %v224
    %249 = vmatprep.subr.mxu0 0.0
    %250 = vmatpush1.msra.mxu0 %v225
    %251 = vmatprep.subr.mxu0 0.0
    %252 = vmatpush1.msra.mxu0 %v226
    %253 = vmatprep.subr.mxu0 0.0
    %254 = vmatpush1.msra.mxu0 %v227
    %255 = vmatprep.subr.mxu0 0.0
    %256 = vmatpush1.msra.mxu0 %v228
    %257 = vmatprep.subr.mxu0 0.0
    %258 = vmatpush1.msra.mxu0 %v229
    %259 = vmatprep.subr.mxu0 0.0
    %260 = vmatpush1.msra.mxu0 %v230
    %261 = vmatprep.subr.mxu0 0.0
    %262 = vmatpush1.msra.mxu0 %v231
    %263 = vmatprep.subr.mxu0 0.0
    %264 = vmatpush1.msra.mxu0 %v232
    %265 = vmatprep.subr.mxu0 0.0
    %266 = vmatpush1.msra.mxu0 %v233
    %267 = vmatprep.subr.mxu0 0.0
    %268 = vmatpush1.msra.mxu0 %v234
    %269 = vmatprep.subr.mxu0 0.0
    %270 = vmatpush1.msra.mxu0 %v235
    %271 = vmatprep.subr.mxu0 0.0
    %272 = vmatpush1.msra.mxu0 %v236
    %273 = vmatprep.subr.mxu0 0.0
    %274 = vmatpush1.msra.mxu0 %v237
    %275 = vmatprep.subr.mxu0 0.0
    %276 = vmatpush1.msra.mxu0 %v238
    %277 = vmatprep.subr.mxu0 0.0
    %278 = vmatpush1.msra.mxu0 %v239
    %279 = vmatprep.subr.mxu0 0.0
    %280 = vmatpush1.msra.mxu0 0.0
    %281 = vmatprep.subr.mxu0 0.0
    %282 = vmatpush1.msra.mxu0 0.0
    %283 = vmatprep.subr.mxu0 0.0
    %284 = vmatpush1.msra.mxu0 0.0
    %285 = vmatprep.subr.mxu0 0.0
    %286 = vmatpush1.msra.mxu0 0.0
    %287 = vmatprep.subr.mxu0 0.0
    %288 = vmatpush1.msra.mxu0 0.0
    %289 = vmatprep.subr.mxu0 0.0
    %290 = vmatpush1.msra.mxu0 0.0
    %291 = vmatprep.subr.mxu0 0.0
    %292 = vmatpush1.msra.mxu0 0.0
    %293 = vmatprep.subr.mxu0 0.0
    %294 = vmatpush1.msra.mxu0 0.0
    %295 = vmatprep.subr.mxu0 0.0
    %296 = vmatpush1.msra.mxu0 0.0
    %297 = vmatprep.subr.mxu0 0.0
    %298 = vmatpush1.msra.mxu0 0.0
    %299 = vmatprep.subr.mxu0 0.0
    %300 = vmatpush1.msra.mxu0 0.0
    %301 = vmatprep.subr.mxu0 0.0
    %302 = vmatpush1.msra.mxu0 0.0
    %303 = vmatprep.subr.mxu0 0.0
    %304 = vmatpush1.msra.mxu0 0.0
    %305 = vmatprep.subr.mxu0 0.0
    %306 = vmatpush1.msra.mxu0 0.0
    %307 = vmatprep.subr.mxu0 0.0
    %308 = vmatpush1.msra.mxu0 0.0
    %309 = vmatprep.subr.mxu0 0.0
    %310 = vmatpush1.msra.mxu0 0.0
    %311 = vmatprep.mubr.f32.mxu0 0.0
    %312 = vmatmul.mubr.f32.gmra.mrb[0].mxu0 %v223
    %v313 = vpop.f32.mrb[0].mxu0
    %v314 = vadd.f32 %v245, %v313
    %v315 = vpop.f32.mrb[0].mxu0
    %316 = vdwg.mxu0
    %v317 = vmax.f32 %v314, 0.0
    %v318 = vld [vmem:[%s7] sm:$0xff]
    %v319 = vld [vmem:[%s7 + $0x8] sm:$0xff]
    %v320 = vld [vmem:[%s7 + $0x10] sm:$0xff]
    %v321 = vld [vmem:[%s7 + $0x18] sm:$0xff]
    %v322 = vld [vmem:[%s7 + $0x20] sm:$0xff]
    %v323 = vld [vmem:[%s7 + $0x28] sm:$0xff]
    %v324 = vld [vmem:[%s7 + $0x30] sm:$0xff]
    %v325 = vld [vmem:[%s7 + $0x38] sm:$0xff]
    %v326 = vld [vmem:[%s7 + $0x40] sm:$0xff]
    %v327 = vld [vmem:[%s7 + $0x48] sm:$0xff]
    %v328 = vld [vmem:[%s7 + $0x50] sm:$0xff]
    %v329 = vld [vmem:[%s7 + $0x58] sm:$0xff]
    %v330 = vld [vmem:[%s7 + $0x60] sm:$0xff]
    %v331 = vld [vmem:[%s7 + $0x68] sm:$0xff]
    %v332 = vld [vmem:[%s7 + $0x70] sm:$0xff]
    %v333 = vld [vmem:[%s7 + $0x78] sm:$0xff]
    %v334 = vld [vmem:[%s8] sm:$0x1]
    %v336 = vlaneseq
    %v337 = vshrl.u32 %v336, 7
    %v338 = vsub.s32 0, %v337
    %v339 = vrot.slane %v334, %v338
    %341 = vmatprep.subr.mxu0 0.0
    %342 = vmatpush1.msra.mxu0 %v318
    %343 = vmatprep.subr.mxu0 0.0
    %344 = vmatpush1.msra.mxu0 %v319
    %345 = vmatprep.subr.mxu0 0.0
    %346 = vmatpush1.msra.mxu0 %v320
    %347 = vmatprep.subr.mxu0 0.0
    %348 = vmatpush1.msra.mxu0 %v321
    %349 = vmatprep.subr.mxu0 0.0
    %350 = vmatpush1.msra.mxu0 %v322
    %351 = vmatprep.subr.mxu0 0.0
    %352 = vmatpush1.msra.mxu0 %v323
    %353 = vmatprep.subr.mxu0 0.0
    %354 = vmatpush1.msra.mxu0 %v324
    %355 = vmatprep.subr.mxu0 0.0
    %356 = vmatpush1.msra.mxu0 %v325
    %357 = vmatprep.subr.mxu0 0.0
    %358 = vmatpush1.msra.mxu0 %v326
    %359 = vmatprep.subr.mxu0 0.0
    %360 = vmatpush1.msra.mxu0 %v327
    %361 = vmatprep.subr.mxu0 0.0
    %362 = vmatpush1.msra.mxu0 %v328
    %363 = vmatprep.subr.mxu0 0.0
    %364 = vmatpush1.msra.mxu0 %v329
    %365 = vmatprep.subr.mxu0 0.0
    %366 = vmatpush1.msra.mxu0 %v330
    %367 = vmatprep.subr.mxu0 0.0
    %368 = vmatpush1.msra.mxu0 %v331
    %369 = vmatprep.subr.mxu0 0.0
    %370 = vmatpush1.msra.mxu0 %v332
    %371 = vmatprep.subr.mxu0 0.0
    %372 = vmatpush1.msra.mxu0 %v333
    %373 = vmatprep.subr.mxu0 0.0
    %374 = vmatpush1.msra.mxu0 0.0
    %375 = vmatprep.subr.mxu0 0.0
    %376 = vmatpush1.msra.mxu0 0.0
    %377 = vmatprep.subr.mxu0 0.0
    %378 = vmatpush1.msra.mxu0 0.0
    %379 = vmatprep.subr.mxu0 0.0
    %380 = vmatpush1.msra.mxu0 0.0
    %381 = vmatprep.subr.mxu0 0.0
    %382 = vmatpush1.msra.mxu0 0.0
    %383 = vmatprep.subr.mxu0 0.0
    %384 = vmatpush1.msra.mxu0 0.0
    %385 = vmatprep.subr.mxu0 0.0
    %386 = vmatpush1.msra.mxu0 0.0
    %387 = vmatprep.subr.mxu0 0.0
    %388 = vmatpush1.msra.mxu0 0.0
    %389 = vmatprep.subr.mxu0 0.0
    %390 = vmatpush1.msra.mxu0 0.0
    %391 = vmatprep.subr.mxu0 0.0
    %392 = vmatpush1.msra.mxu0 0.0
    %393 = vmatprep.subr.mxu0 0.0
    %394 = vmatpush1.msra.mxu0 0.0
    %395 = vmatprep.subr.mxu0 0.0
    %396 = vmatpush1.msra.mxu0 0.0
    %397 = vmatprep.subr.mxu0 0.0
    %398 = vmatpush1.msra.mxu0 0.0
    %399 = vmatprep.subr.mxu0 0.0
    %400 = vmatpush1.msra.mxu0 0.0
    %401 = vmatprep.subr.mxu0 0.0
    %402 = vmatpush1.msra.mxu0 0.0
    %403 = vmatprep.subr.mxu0 0.0
    %404 = vmatpush1.msra.mxu0 0.0
    %405 = vmatprep.mubr.f32.mxu0 0.0
    %406 = vmatmul.mubr.f32.gmra.mrb[0].mxu0 %v317
    %v407 = vpop.f32.mrb[0].mxu0
    %v408 = vadd.f32 %v339, %v407
    %v409 = vpop.f32.mrb[0].mxu0
    %410 = vdwg.mxu0
    %vm411 = vcmask 31744
    %412 = vst.msk [vmem:[%s9] sm:$0xff] %vm411, %v408
    // Predicated region
    $region42: #{qnetwork_forward.1} parent=1 // pred_check
      _
    $region43: #{qnetwork_forward.1} parent=1 // pred_check_branch
      %414 = sbr.rel (0) target = $region45
    $region44: #{qnetwork_forward.1} parent=1 // pred_region
      _
    $region45: #{qnetwork_forward.1} parent=1 // pred_fallthru
      _
    // Predicated region
    $region46: #{qnetwork_forward.1} parent=1 // pred_check
      _
    $region47: #{qnetwork_forward.1} parent=1 // pred_check_branch
      %416 = sbr.rel (0) target = $region49
    $region48: #{qnetwork_forward.1} parent=1 // pred_region
      _
    $region49: #{qnetwork_forward.1} parent=1 // pred_fallthru
      _
    %417 = vsyncpa [#allocation3], 1

</llo_original>
